<compile_context>
chip_gen: v7x
topology: tpu7x:2x2x1
jax: 0.10.0
libtpu: 0.0.40
codegen_flags: <defaults>
</compile_context>

<pallas_src>
import jax
import jax.numpy as jnp
from jax.experimental import pallas as pl
from jax.experimental.pallas import tpu as pltpu

_VMEM = pltpu.MemorySpace.VMEM
_SMEM = pltpu.MemorySpace.SMEM


# ----------------------------------------------------------------------------
# weighted_average fusion:  p = (1 - sigmoid(raw_alpha)) * p_text
#                               +      sigmoid(raw_alpha) * p_image
# ----------------------------------------------------------------------------
def weighted_average_fusion(raw_alpha, p_text, p_img):
    """Default path: plain JAX — XLA fuses this into neighbouring ops; a
    dedicated pallas_call here is pure launch/DMA overhead."""
    alpha = jax.nn.sigmoid(raw_alpha[0])
    return ((1.0 - alpha) * p_text + alpha * p_img).astype(p_text.dtype)


def _weighted_average_kernel(alpha_ref, p_text_ref, p_img_ref, o_ref):
    alpha = alpha_ref[0]                      # already sigmoid-ed, SMEM scalar
    o_ref[...] = ((1.0 - alpha) * p_text_ref[...]
                  + alpha * p_img_ref[...]).astype(o_ref.dtype)


def weighted_average_fusion_pallas(raw_alpha, p_text, p_img):
    """Gridless Pallas variant, kept for reference/testing only.
    alpha is computed OUTSIDE the kernel (scalar unit has no transcendental)."""
    alpha = jax.nn.sigmoid(raw_alpha).astype(jnp.float32)   # (1,)
    return pl.pallas_call(
        _weighted_average_kernel,
        in_specs=[
            pl.BlockSpec(memory_space=_SMEM),   # alpha  (1,)
            pl.BlockSpec(memory_space=_VMEM),   # p_text (B, C)
            pl.BlockSpec(memory_space=_VMEM),   # p_img  (B, C)
        ],
        out_specs=pl.BlockSpec(memory_space=_VMEM),
        out_shape=jax.ShapeDtypeStruct(p_text.shape, p_text.dtype),
    )(alpha, p_text, p_img)


# ----------------------------------------------------------------------------
# network fusion:
#   sigmoid( ReLU( cat([p_t, p_i, e_t, e_i]) @ W1 + b1 ) @ W2 + b2 )
# with the concat performed inside the kernel via pre-split weights.
# ----------------------------------------------------------------------------
def prepare_network_params(w1, b1, w2, b2, *, text_feat_dim, image_feat_dim,
                           lane=128):
    """Pack / zero-pad the MLP parameters ONCE at init time (cached).

    W1 (in_dim, H) is split by input block:
      row 0        -> p_text   (rank-1 broadcast in-kernel),
      row 1        -> p_image  (rank-1 broadcast in-kernel),
      rows 2:2+Dt  -> text_emb (MXU dot),
      rows 2+Dt:   -> img_emb  (MXU dot).
    Hidden dim padded to a multiple of 128 (lane-dense), with one spare
    padded column reserved as a constant-1 hidden unit that carries b2:
      b1_pad[H] = 1.0,  w2_pad[H] = b2  ->  ReLU(1.0) * b2 == b2 exactly.
    All padding is a numerical identity through ReLU + the final reduce.
    """
    in_dim, h = w1.shape
    assert in_dim == 2 + text_feat_dim + image_feat_dim
    hp = -(-(h + 1) // lane) * lane      # >= h+1, multiple of 128

    w1 = w1.astype(jnp.float32)
    b1 = jnp.reshape(b1, (h,)).astype(jnp.float32)
    w2 = jnp.reshape(w2, (h,)).astype(jnp.float32)
    b2 = jnp.reshape(b2, ()).astype(jnp.float32)

    w_emb_t = jnp.zeros((text_feat_dim, hp), jnp.float32).at[:, :h].set(
        w1[2:2 + text_feat_dim])
    w_emb_i = jnp.zeros((image_feat_dim, hp), jnp.float32).at[:, :h].set(
        w1[2 + text_feat_dim:])

    # One packed (8, Hp) VMEM tile: fewer refs -> fewer DMA descriptors/call.
    w_pack = jnp.zeros((8, hp), jnp.float32)
    w_pack = w_pack.at[0, :h].set(w1[0])     # W1 row for p_text
    w_pack = w_pack.at[1, :h].set(w1[1])     # W1 row for p_image
    w_pack = w_pack.at[2, :h].set(b1)        # b1
    w_pack = w_pack.at[2, h].set(1.0)        # constant-1 hidden unit
    w_pack = w_pack.at[3, :h].set(w2)        # W2 as a lane-dense row
    w_pack = w_pack.at[3, h].set(b2)         # b2 rides the constant-1 unit

    return {"w_emb_t": w_emb_t, "w_emb_i": w_emb_i, "w_pack": w_pack,
            "hidden": h, "hidden_padded": hp}


def _fusion_net_kernel(pt_ref, pi_ref, et_ref, ei_ref,
                       wet_ref, wei_ref, wpack_ref, o_ref):
    wp = wpack_ref[...]                                       # (8, Hp)
    # Layer 1: two small MXU dots (embedding blocks of W1) + two rank-1
    # broadcasts (probability rows of W1) + b1 — i.e. the concat done in-place.
    h = jnp.dot(et_ref[...], wet_ref[...], preferred_element_type=jnp.float32)
    h = h + jnp.dot(ei_ref[...], wei_ref[...],
                    preferred_element_type=jnp.float32)
    h = h + pt_ref[...] * wp[0:1, :]                          # (B,1)*(1,Hp)
    h = h + pi_ref[...] * wp[1:2, :]
    h = h + wp[2:3, :]                                        # b1 (+1 marker)
    h = jnp.maximum(h, 0.0)                                   # ReLU (VPU)
    # Layer 2 (out_features = 1): VPU multiply + XLU lane reduction; b2 is
    # already folded in via the constant-1 hidden unit.
    logits = jnp.sum(h * wp[3:4, :], axis=-1, keepdims=True)
    o_ref[...] = jax.nn.sigmoid(logits).astype(o_ref.dtype)


def network_fusion(text_emb, text_prob, img_emb, img_prob, packed):
    """packed = prepare_network_params(...) — built once, reused every call.

    NOTE(serving batch sizes): add a grid axis over B with
    dimension_semantics=("parallel",) (v7x: 2 TCs), give the three weight refs
    a constant index_map (lambda i: (0, 0)) so the ~37 KB of weights is DMA'd
    once and stays VMEM-resident, emit a lane-major (1, B) output block
    (transpose the per-tile logits in-kernel) and reshape to (B, 1) in the
    wrapper, size the B tile against v7x's 64 MiB VMEM (pick the largest that
    fits), and on v6e/v5e cast x/W1 to bf16 at the MXU (keep f32 accumulate +
    f32 elementwise — v5e's VPU/EUP are f32-only).  At B=8 all of this is
    launch-latency noise, so the single gridless call below is best.
    """
    B = text_emb.shape[0]
    dt = packed["w_emb_t"].shape[0]
    di = packed["w_emb_i"].shape[0]
    hp = packed["hidden_padded"]

    cost = pl.CostEstimate(
        flops=int(2 * B * (dt + di) * hp + 6 * B * hp),
        transcendentals=int(B),
        bytes_accessed=int(4 * (B * (dt + di + 2) + (dt + di + 8) * hp + B)),
    )

    return pl.pallas_call(
        _fusion_net_kernel,
        in_specs=[
            pl.BlockSpec(memory_space=_VMEM),   # text_prob (B, 1)
            pl.BlockSpec(memory_space=_VMEM),   # img_prob  (B, 1)
            pl.BlockSpec(memory_space=_VMEM),   # text_emb  (B, Dt)
            pl.BlockSpec(memory_space=_VMEM),   # img_emb   (B, Di)
            pl.BlockSpec(memory_space=_VMEM),   # W1[e_t]   (Dt, Hp)
            pl.BlockSpec(memory_space=_VMEM),   # W1[e_i]   (Di, Hp)
            pl.BlockSpec(memory_space=_VMEM),   # packed rows (8, Hp)
        ],
        out_specs=pl.BlockSpec(memory_space=_VMEM),
        out_shape=jax.ShapeDtypeStruct((B, 1), jnp.float32),
        cost_estimate=cost,
    )(text_prob.astype(jnp.float32), img_prob.astype(jnp.float32),
      text_emb.astype(jnp.float32), img_emb.astype(jnp.float32),
      packed["w_emb_t"], packed["w_emb_i"], packed["w_pack"])


# ----------------------------------------------------------------------------
# Fusion wrapper (mirrors the torch module's forward dispatch)
# ----------------------------------------------------------------------------
def fusion_forward(fusion_type, params, text_emb, text_prob, img_emb, img_prob):
    if fusion_type == "weighted_average":
        return weighted_average_fusion(params["raw_alpha"], text_prob, img_prob)
    elif fusion_type == "network":
        return network_fusion(text_emb, text_prob, img_emb, img_prob, params)
    else:
        raise ValueError(f"Unsupported fusion_type '{fusion_type}'")


if __name__ == "__main__":
    key = jax.random.PRNGKey(0)
    B, Dt, Di = 8, 32, 32
    in_dim = 2 + Dt + Di                       # 66
    H = max(16, in_dim // 4)                   # 16 (matches torch default)

    k = iter(jax.random.split(key, 10))
    text_emb = jax.random.normal(next(k), (B, Dt), jnp.float32)
    img_emb = jax.random.normal(next(k), (B, Di), jnp.float32)
    text_prob = jax.nn.sigmoid(jax.random.normal(next(k), (B, 1), jnp.float32))
    img_prob = jax.nn.sigmoid(jax.random.normal(next(k), (B, 1), jnp.float32))

    # --- weighted_average path ---
    raw_alpha = jnp.array([0.3], jnp.float32)
    out_wa = jax.block_until_ready(
        fusion_forward("weighted_average", {"raw_alpha": raw_alpha},
                       text_emb, text_prob, img_emb, img_prob))
    alpha = jax.nn.sigmoid(raw_alpha[0])
    ref_wa = (1.0 - alpha) * text_prob + alpha * img_prob
    assert jnp.allclose(out_wa, ref_wa, atol=1e-6), "weighted_average mismatch"

    # Pallas variant of weighted_average (reference path, verified once).
    out_wa_pl = jax.block_until_ready(
        weighted_average_fusion_pallas(raw_alpha, text_prob, img_prob))
    assert jnp.allclose(out_wa_pl, ref_wa, atol=1e-6), "WA pallas mismatch"

    # --- network path ---
    w1 = jax.random.normal(next(k), (in_dim, H), jnp.float32) * 0.05
    b1 = jax.random.normal(next(k), (1, H), jnp.float32) * 0.05
    w2 = jax.random.normal(next(k), (H, 1), jnp.float32) * 0.05
    b2 = jax.random.normal(next(k), (1, 1), jnp.float32) * 0.05
    packed = prepare_network_params(
        w1, b1, w2, b2, text_feat_dim=Dt, image_feat_dim=Di)  # once, at init

    out_net = jax.block_until_ready(
        fusion_forward("network", packed,
                       text_emb, text_prob, img_emb, img_prob))
    concat = jnp.concatenate([text_prob, img_prob, text_emb, img_emb], axis=-1)
    ref_net = jax.nn.sigmoid(jnp.maximum(concat @ w1 + b1, 0.0) @ w2 + b2)
    assert out_net.shape == (B, 1)
    assert jnp.allclose(out_net, ref_net, atol=1e-5), "network fusion mismatch"

    print("KERNEL_OK")
</pallas_src>

<mosaic_0001>
module attributes {stable_mosaic.version = 11 : i64} {
  func.func @_weighted_average_kernel(%arg0: memref<1xf32, #tpu.memory_space<smem>>, %arg1: memref<8x1xf32, #tpu.memory_space<vmem>>, %arg2: memref<8x1xf32, #tpu.memory_space<vmem>>, %arg3: memref<8x1xf32, #tpu.memory_space<vmem>>) attributes {dimension_semantics = [], scalar_prefetch = 0 : i64, scratch_operands = 0 : i64, tpu.core_type = #tpu.core_type<tc>} {
    %c0 = arith.constant 0 : index
    %0 = memref.load %arg0[%c0] : memref<1xf32, #tpu.memory_space<smem>>
    %cst = arith.constant 1.000000e+00 : f32
    %1 = arith.subf %cst, %0 : f32
    %c0_0 = arith.constant 0 : index
    %c0_1 = arith.constant 0 : index
    %2 = vector.load %arg1[%c0_0, %c0_1] : memref<8x1xf32, #tpu.memory_space<vmem>>, vector<8x1xf32>
    %3 = vector.broadcast %1 : f32 to vector<8x1xf32>
    %4 = arith.mulf %3, %2 : vector<8x1xf32>
    %c0_2 = arith.constant 0 : index
    %c0_3 = arith.constant 0 : index
    %5 = vector.load %arg2[%c0_2, %c0_3] : memref<8x1xf32, #tpu.memory_space<vmem>>, vector<8x1xf32>
    %6 = vector.broadcast %0 : f32 to vector<8x1xf32>
    %7 = arith.mulf %6, %5 : vector<8x1xf32>
    %8 = arith.addf %4, %7 : vector<8x1xf32>
    %c0_4 = arith.constant 0 : index
    %c0_5 = arith.constant 0 : index
    %9 = vector.load %arg3[%c0_4, %c0_5] : memref<8x1xf32, #tpu.memory_space<vmem>>, vector<8x1xf32>
    tpu.vector_store %arg3[%c0_4, %c0_5], %8 {strides = array<i32>} : memref<8x1xf32, #tpu.memory_space<vmem>>, vector<8x1xf32>,
    return
  }
}

</mosaic_0001>

<llo_original>
// kernel: tpu_custom_call.1
$region0: #{tpu_custom_call.1}
  #allocation0 [shape = 'u32[]', space=smem, size = 0x4, offset = 0x4, fixed_abs, tag = 'smem constant byte address 0x4 - core index']
  #allocation1 [shape = 'u32[144,128]{1,0:T(1,128)}', space=vmem, size = 0x12000, scoped, tag = 'internal scratch']
  #allocation2 [shape = 'f32[1]{0:T(128)S(6)}', space=smem, size = 0x200, scoped, tag = 'scoped memory for tpu_custom_call.1']
  %s0 = inlined_call_operand.<no memory space> [shape: f32[1], index: 0, kind: input, shape index: {}]
  %s1 = inlined_call_operand.vmem [shape: f32[8,1], index: 1, kind: input, shape index: {}]
  %s2 = inlined_call_operand.vmem [shape: f32[8,1], index: 2, kind: input, shape index: {}]
  %s3 = inlined_call_operand.vmem [shape: f32[8,1], index: 3, kind: output, shape index: {}]
  %s4 = sld [smem:[#allocation0]]
  $region22: #{tpu_custom_call.1} parent=0
    _
  %s6 = ssub.s32 1, %s4
  %s7 = scalar_select 0, %s6, %s4
  %8 = sst [smem:[#allocation2]] %s0
  // Predicated region
  $region2: #{tpu_custom_call.1} parent=0 // pred_check
    _
  $region3: #{tpu_custom_call.1} parent=0 // pred_check_branch
    %10 = sbr.rel (0) target = $region5
  $region4: #{tpu_custom_call.1} parent=0 // pred_region
    _
  $region5: #{tpu_custom_call.1} parent=0 // pred_fallthru
    _
  // Predicated region
  $region6: #{tpu_custom_call.1} parent=0 // pred_check
    _
  $region7: #{tpu_custom_call.1} parent=0 // pred_check_branch
    %12 = sbr.rel (0) target = $region9
  $region8: #{tpu_custom_call.1} parent=0 // pred_region
    _
  $region9: #{tpu_custom_call.1} parent=0 // pred_fallthru
    _
  // Predicated region
  $region10: #{tpu_custom_call.1} parent=0 // pred_check
    _
  $region11: #{tpu_custom_call.1} parent=0 // pred_check_branch
    %14 = sbr.rel (0) target = $region13
  $region12: #{tpu_custom_call.1} parent=0 // pred_region
    _
  $region13: #{tpu_custom_call.1} parent=0 // pred_fallthru
    _
  %s15 = sld [smem:[#allocation2]]
  %s16 = ssub.f32 1.0, %s15
  %v17 = vld [vmem:[%s1] sm:$0xff]
  %v18 = vstv %s16
  %v19 = vmul.f32 %v18, %v17
  %v20 = vld [vmem:[%s2] sm:$0xff]
  %v21 = vstv %s15
  %v22 = vmul.f32 %v21, %v20
  %v23 = vadd.f32 %v19, %v22
  %vm24 = vcmask 7168
  %25 = vst.msk [vmem:[%s3] sm:$0xff] %vm24, %v23
  // Predicated region
  $region14: #{tpu_custom_call.1} parent=0 // pred_check
    _
  $region15: #{tpu_custom_call.1} parent=0 // pred_check_branch
    %27 = sbr.rel (0) target = $region17
  $region16: #{tpu_custom_call.1} parent=0 // pred_region
    _
  $region17: #{tpu_custom_call.1} parent=0 // pred_fallthru
    _
  // Predicated region
  $region18: #{tpu_custom_call.1} parent=0 // pred_check
    _
  $region19: #{tpu_custom_call.1} parent=0 // pred_check_branch
    %29 = sbr.rel (0) target = $region21
  $region20: #{tpu_custom_call.1} parent=0 // pred_region
    _
  $region21: #{tpu_custom_call.1} parent=0 // pred_fallthru
    _

</llo_original>
